<compile_context>
chip_gen: v5e
topology: v5e:2x2
jax: 0.10.0
libtpu: 0.0.40
codegen_flags: <defaults>
</compile_context>

<pallas_src>
import functools

import jax
import jax.numpy as jnp
from jax.experimental import pallas as pl
from jax.experimental.pallas import tpu as pltpu


def _layernorm_kernel(x_ref, w_ref, b_ref, o_ref, *, eps, c_true):
    # x_ref: (Cp, tT) tile of one batch element; w_ref / b_ref: (Cp, 1).
    c_pad = x_ref.shape[0]
    x = x_ref[...].astype(jnp.float32)                      # (Cp, tT)
    # Hoist the (Cp, 1) param cast/broadcast: read once, reuse below.
    w = w_ref[...].astype(jnp.float32)                      # (Cp, 1)
    b = b_ref[...].astype(jnp.float32)                      # (Cp, 1)

    inv_c = 1.0 / float(c_true)                             # static scalar
    # Padded rows (if any) are zero, so the plain sum gives the true sum.
    mu = jnp.sum(x, axis=0, keepdims=True) * inv_c          # (1, tT)
    res = x - mu                                            # (Cp, tT)
    if c_true != c_pad:
        # Mask padded rows so they don't pollute the (biased) variance sum.
        row = jax.lax.broadcasted_iota(jnp.int32, res.shape, 0)
        res = jnp.where(row < c_true, res, 0.0)
    sigma = jnp.sum(res * res, axis=0, keepdims=True) * inv_c  # (1, tT)

    # rsqrt on the (1, tT) row (EUP) + cheap VALU broadcast-multiply, instead
    # of a per-element divide.  Matches torch: res / sqrt(var + eps).
    inv = jax.lax.rsqrt(sigma + eps)                        # (1, tT)
    out = res * inv * w + b                                 # affine scale/shift
    o_ref[...] = out.astype(o_ref.dtype)


def _choose_tile_t(c_pad, t, itemsize):
    """Pick a lane-dense T tile: multiple of 128 dividing T, ~2 MiB / buffer."""
    if t % 128 != 0:
        # Full-dim block is always legal; keeps small / ragged T simple.
        return t
    budget = 2 * 1024 * 1024                                # bytes per buffer
    t_tile = max(128, min(t, (budget // (max(c_pad, 8) * itemsize)) // 128 * 128))
    while t % t_tile != 0:                                  # terminates at 128
        t_tile -= 128
    return max(t_tile, 128)


def layer_norm_bct(x, weight, bias, eps=1e-5):
    """x: (B, C, T); weight, bias: (C, 1) (torch stores them as (1, C, 1))."""
    B, C, T = x.shape

    # Pad C to the sublane multiple so the reduce / store paths are unmasked.
    sub = 8 if x.dtype.itemsize >= 4 else 16
    Cp = -(-C // sub) * sub
    if Cp != C:
        x = jnp.pad(x, ((0, 0), (0, Cp - C), (0, 0)))
        weight = jnp.pad(weight, ((0, Cp - C), (0, 0)))
        bias = jnp.pad(bias, ((0, Cp - C), (0, 0)))

    tT = _choose_tile_t(Cp, T, x.dtype.itemsize)
    grid = (B, T // tT)

    kernel = functools.partial(_layernorm_kernel, eps=eps, c_true=C)
    out = pl.pallas_call(
        kernel,
        out_shape=jax.ShapeDtypeStruct((B, Cp, T), x.dtype),
        grid=grid,
        in_specs=[
            # x: one (Cp, tT) lane-dense tile per (batch, T-tile) grid step.
            # NOTE: pipeline_mode=pl.Buffered(3) can help on v7x if DMA issue
            # latency shows up after tiling; default 2-deep is fine elsewhere.
            pl.BlockSpec((None, Cp, tT), lambda bi, ti: (bi, 0, ti)),
            pl.BlockSpec((Cp, 1), lambda bi, ti: (0, 0)),   # weight (broadcast)
            pl.BlockSpec((Cp, 1), lambda bi, ti: (0, 0)),   # bias   (broadcast)
        ],
        out_specs=pl.BlockSpec((None, Cp, tT), lambda bi, ti: (bi, 0, ti)),
        compiler_params=pltpu.CompilerParams(
            dimension_semantics=("parallel", "parallel")),
    )(x, weight, bias)

    if Cp != C:
        out = out[:, :C, :]
    return out


def _reference_layer_norm(x, weight, bias, eps=1e-5):
    xf = x.astype(jnp.float32)
    mu = jnp.mean(xf, axis=1, keepdims=True)
    res = xf - mu
    sigma = jnp.mean(res * res, axis=1, keepdims=True)
    out = res / jnp.sqrt(sigma + eps)
    out = out * weight[None, :, :] + bias[None, :, :]
    return out.astype(x.dtype)


if __name__ == "__main__":
    key = jax.random.PRNGKey(0)

    # Case 1: small, ragged shapes (C=4 exercises the padded-C path,
    # T=16 exercises the full-T block path).  Matches the module's forward.
    B, C, T = 2, 4, 16
    x = jax.random.normal(key, (B, C, T), dtype=jnp.float32)
    weight = jnp.ones((C, 1), dtype=jnp.float32)   # nn.Parameter(torch.ones)
    bias = jnp.zeros((C, 1), dtype=jnp.float32)    # nn.Parameter(torch.zeros)

    out = jax.block_until_ready(layer_norm_bct(x, weight, bias, eps=1e-5))
    ref = _reference_layer_norm(x, weight, bias, eps=1e-5)
    assert out.shape == (B, C, T)
    assert jnp.allclose(out, ref, atol=1e-5, rtol=1e-5), "mismatch vs reference (small)"

    # Case 2: lane-aligned shapes exercising the tiled-T path.
    B2, C2, T2 = 2, 8, 512
    x2 = jax.random.normal(jax.random.PRNGKey(1), (B2, C2, T2), dtype=jnp.float32)
    w2 = jnp.ones((C2, 1), dtype=jnp.float32)
    b2 = jnp.zeros((C2, 1), dtype=jnp.float32)

    out2 = jax.block_until_ready(layer_norm_bct(x2, w2, b2, eps=1e-5))
    ref2 = _reference_layer_norm(x2, w2, b2, eps=1e-5)
    assert out2.shape == (B2, C2, T2)
    assert jnp.allclose(out2, ref2, atol=1e-5, rtol=1e-5), "mismatch vs reference (tiled)"

    print("KERNEL_OK")
</pallas_src>

<mosaic_0001>
module attributes {stable_mosaic.version = 11 : i64} {
  func.func @_layernorm_kernel(%arg0: i32, %arg1: i32, %arg2: memref<1x8x16xf32, #tpu.memory_space<vmem>>, %arg3: memref<8x1xf32, #tpu.memory_space<vmem>>, %arg4: memref<8x1xf32, #tpu.memory_space<vmem>>, %arg5: memref<1x8x16xf32, #tpu.memory_space<vmem>>) attributes {dimension_semantics = [#tpu.dimension_semantics<parallel>, #tpu.dimension_semantics<parallel>], iteration_bounds = array<i64: 2, 1>, scalar_prefetch = 0 : i64, scratch_operands = 0 : i64, tpu.core_type = #tpu.core_type<tc>, window_params = [{transform_indices = @transform_0, window_bounds = array<i64: 1, 8, 16>}, {pipeline_mode = #tpu.pipeline_mode<synchronous>, transform_indices = @transform_1, window_bounds = array<i64: 8, 1>}, {pipeline_mode = #tpu.pipeline_mode<synchronous>, transform_indices = @transform_2, window_bounds = array<i64: 8, 1>}, {transform_indices = @transform_3, window_bounds = array<i64: 1, 8, 16>}]} {
    %c0 = arith.constant 0 : index
    %c0_0 = arith.constant 0 : index
    %c0_1 = arith.constant 0 : index
    %0 = vector.load %arg2[%c0, %c0_0, %c0_1] : memref<1x8x16xf32, #tpu.memory_space<vmem>>, vector<1x8x16xf32>
    %1 = vector.shape_cast %0 : vector<1x8x16xf32> to vector<8x16xf32>
    %c0_2 = arith.constant 0 : index
    %c0_3 = arith.constant 0 : index
    %2 = vector.load %arg3[%c0_2, %c0_3] : memref<8x1xf32, #tpu.memory_space<vmem>>, vector<8x1xf32>
    %c0_4 = arith.constant 0 : index
    %c0_5 = arith.constant 0 : index
    %3 = vector.load %arg4[%c0_4, %c0_5] : memref<8x1xf32, #tpu.memory_space<vmem>>, vector<8x1xf32>
    %cst = arith.constant dense<0.000000e+00> : vector<16xf32>
    %4 = vector.multi_reduction <add>, %1, %cst [0] : vector<8x16xf32> to vector<16xf32>
    %5 = vector.shape_cast %4 : vector<16xf32> to vector<1x16xf32>
    %cst_6 = arith.constant 2.500000e-01 : f32
    %6 = vector.broadcast %cst_6 : f32 to vector<1x16xf32>
    %7 = arith.mulf %5, %6 : vector<1x16xf32>
    %8 = vector.broadcast %7 : vector<1x16xf32> to vector<8x16xf32>
    %9 = arith.subf %1, %8 : vector<8x16xf32>
    %10 = tpu.iota {dimensions = array<i32: 0>} : vector<8x16xi32>
    %c4_i32 = arith.constant 4 : i32
    %11 = vector.broadcast %c4_i32 : i32 to vector<8x16xi32>
    %12 = arith.cmpi slt, %10, %11 : vector<8x16xi32>
    %cst_7 = arith.constant 0.000000e+00 : f32
    %13 = vector.broadcast %cst_7 : f32 to vector<8x16xf32>
    %14 = arith.select %12, %9, %13 : vector<8x16xi1>, vector<8x16xf32>
    %15 = arith.mulf %14, %14 : vector<8x16xf32>
    %cst_8 = arith.constant dense<0.000000e+00> : vector<16xf32>
    %16 = vector.multi_reduction <add>, %15, %cst_8 [0] : vector<8x16xf32> to vector<16xf32>
    %17 = vector.shape_cast %16 : vector<16xf32> to vector<1x16xf32>
    %cst_9 = arith.constant 2.500000e-01 : f32
    %18 = vector.broadcast %cst_9 : f32 to vector<1x16xf32>
    %19 = arith.mulf %17, %18 : vector<1x16xf32>
    %cst_10 = arith.constant 9.99999974E-6 : f32
    %20 = vector.broadcast %cst_10 : f32 to vector<1x16xf32>
    %21 = arith.addf %19, %20 : vector<1x16xf32>
    %22 = math.rsqrt %21 : vector<1x16xf32>
    %23 = vector.broadcast %22 : vector<1x16xf32> to vector<8x16xf32>
    %24 = arith.mulf %14, %23 : vector<8x16xf32>
    %25 = vector.broadcast %2 : vector<8x1xf32> to vector<8x16xf32>
    %26 = arith.mulf %24, %25 : vector<8x16xf32>
    %27 = vector.broadcast %3 : vector<8x1xf32> to vector<8x16xf32>
    %28 = arith.addf %26, %27 : vector<8x16xf32>
    %c0_11 = arith.constant 0 : index
    %c0_12 = arith.constant 0 : index
    %c0_13 = arith.constant 0 : index
    %29 = vector.load %arg5[%c0_11, %c0_12, %c0_13] : memref<1x8x16xf32, #tpu.memory_space<vmem>>, vector<1x8x16xf32>
    %30 = vector.shape_cast %29 : vector<1x8x16xf32> to vector<8x16xf32>
    %31 = vector.shape_cast %28 : vector<8x16xf32> to vector<1x8x16xf32>
    tpu.vector_store %arg5[%c0_11, %c0_12, %c0_13], %31 {strides = array<i32>} : memref<1x8x16xf32, #tpu.memory_space<vmem>>, vector<1x8x16xf32>,
    return
  }
  func.func @transform_0(%arg0: i32, %arg1: i32) -> (i32, i32, i32) {
    %c0_i32 = arith.constant 0 : i32
    %c0_i32_0 = arith.constant 0 : i32
    return %arg0, %c0_i32, %arg1 : i32, i32, i32
  }
  func.func @transform_1(%arg0: i32, %arg1: i32) -> (i32, i32) {
    %c0_i32 = arith.constant 0 : i32
    %c0_i32_0 = arith.constant 0 : i32
    %c0_i32_1 = arith.constant 0 : i32
    return %c0_i32, %c0_i32_0 : i32, i32
  }
  func.func @transform_2(%arg0: i32, %arg1: i32) -> (i32, i32) {
    %c0_i32 = arith.constant 0 : i32
    %c0_i32_0 = arith.constant 0 : i32
    %c0_i32_1 = arith.constant 0 : i32
    return %c0_i32, %c0_i32_0 : i32, i32
  }
  func.func @transform_3(%arg0: i32, %arg1: i32) -> (i32, i32, i32) {
    %c0_i32 = arith.constant 0 : i32
    %c0_i32_0 = arith.constant 0 : i32
    return %arg0, %c0_i32, %arg1 : i32, i32, i32
  }
}

</mosaic_0001>

<llo_original>
// kernel: tpu_custom_call.1
$region0: #{tpu_custom_call.1}
  #allocation0 [shape = 'u32[]', space=smem, size = 0x4, offset = 0x4, fixed_abs, tag = 'smem constant byte address 0x4 - core index']
  #allocation1 [shape = 'u32[72,128]{1,0:T(1,128)}', space=vmem, size = 0x9000, scoped, tag = 'internal scratch']
  %s0 = inlined_call_operand.vmem [shape: f32[2,8,16], index: 0, kind: input, shape index: {}]
  %s1 = inlined_call_operand.vmem [shape: f32[8,1], index: 1, kind: input, shape index: {}]
  %s2 = inlined_call_operand.vmem [shape: f32[8,1], index: 2, kind: input, shape index: {}]
  %s3 = inlined_call_operand.hbm [shape: f32[2,8,16], index: 3, kind: output, shape index: {}]
  %s4 = sld [smem:[#allocation0]]
  $region45: #{tpu_custom_call.1} parent=0
    _
  %s6 = ssub.s32 1, %s4
  %s7 = scalar_select 0, %s6, %s4
  $region1: #{tpu_custom_call.1} parent=0
    #allocation2 [shape = 'u8[8192]{0}', space=vmem, size = 0x2000, scoped, tag = 'output window, operand 0']
    #allocation3 [shape = 's32[2]{0}', space=sflag, size = 0x8, scoped, tag = 'scoped memory for tpu_custom_call.1']
    %8 = vsyncpa [#allocation3], 0
    %s9 = scalar_lea.sflag [#allocation3], 1
    %10 = vsyncpa %s9, 0
    loop: start=0, step=1, limit=4
    $region2: #{tpu_custom_call.1} parent=1 // loop_pre_header
      _
    $region3: #{tpu_custom_call.1} parent=1 // loop_header
      %s12 = sphi 0, %s16
      %p13 = scmp.ge.s32.totalorder %s12, 4
      %s19 = sphi 0, %s31
      %s20 = sphi 0, %s27
      %s21 = sphi 0, %s19
      %s22 = sphi 0, %s20
      %s23 = sphi 0, %s21
      %s24 = sphi 0, %s22
      %s36 = sphi 0, %s38
      %s39 = sphi 0, %s36
      %s40 = sphi 0, %s39
      %s56 = sphi 0, %s40
      %s60 = sphi 0, %s60
      %s62 = sphi 0, %s60
      %s63 = sphi 0, %s62
      %s77 = sphi 0, %s63
      %s81 = sphi 0, %s81
      %s83 = sphi 0, %s81
      %s84 = sphi 0, %s83
      %s98 = sphi 0, %s84
      %s106 = sphi 0, %s108
      %s109 = sphi 0, %s106
      %s110 = sphi 0, %s109
      %s126 = sphi 0, %s110
    $region4: #{tpu_custom_call.1} parent=1 // loop_header_branch
      %15 = sbr.rel (%p13) target = $region8
    $region5: #{tpu_custom_call.1} parent=1 // loop_body
      %s17 = ssub.s32 %s12, 1
      %s18 = ssub.s32 %s12, 2
      %s25 = sadd.s32 1, %s20
      %p26 = scmp.ge.s32.totalorder %s25, 1
      %s27 = scalar_select %p26, 0, %s25
      %s28 = sadd.s32 1, %s19
      %s29 = scalar_select %p26, %s28, %s19
      %p30 = scmp.ge.s32.totalorder %s29, 2
      %s31 = scalar_select %p30, 0, %s29
      %s32 = ssub.s32 %s19, %s31
      %s33 = ssub.s32 %s20, %s27
      %s34 = sor.u32 %s32, %s33
      %p35 = scmp.eq.s32.totalorder %s34, 0
      %s37 = sadd.s32 %s36, 1
      %s38 = scalar_select %p35, %s36, %s37
      %p41 = pneg %p35
      %p42 = scmp.eq.s32.totalorder %s12, 1
      %p43 = por %p41, %p42
      %p44 = scmp.ne.s32.totalorder %s36, %s39
      %p45 = scmp.eq.s32.totalorder %s12, 0
      %p46 = por %p44, %p45
      %p47 = scmp.ne.s32.totalorder %s36, %s39
      %p48 = scmp.eq.s32.totalorder %s17, 1
      %p49 = por %p47, %p48
      %p50 = scmp.ne.s32.totalorder %s39, %s40
      %p51 = scmp.eq.s32.totalorder %s17, 0
      %p52 = por %p50, %p51
      %p53 = scmp.ne.s32.totalorder %s39, %s40
      %p54 = scmp.eq.s32.totalorder %s18, 1
      %p55 = por %p53, %p54
      %p57 = scmp.ne.s32.totalorder %s40, %s56
      %p58 = scmp.eq.s32.totalorder %s18, 0
      %p59 = por %p57, %p58
      %s61 = sadd.s32 %s60, 1
      %p64 = scmp.eq.s32.totalorder %s12, 1
      %p65 = scmp.ne.s32.totalorder %s60, %s62
      %p66 = scmp.eq.s32.totalorder %s12, 0
      %p67 = por %p65, %p66
      %p68 = scmp.ne.s32.totalorder %s60, %s62
      %p69 = scmp.eq.s32.totalorder %s17, 1
      %p70 = por %p68, %p69
      %p71 = scmp.ne.s32.totalorder %s62, %s63
      %p72 = scmp.eq.s32.totalorder %s17, 0
      %p73 = por %p71, %p72
      %p74 = scmp.ne.s32.totalorder %s62, %s63
      %p75 = scmp.eq.s32.totalorder %s18, 1
      %p76 = por %p74, %p75
      %p78 = scmp.ne.s32.totalorder %s63, %s77
      %p79 = scmp.eq.s32.totalorder %s18, 0
      %p80 = por %p78, %p79
      %s82 = sadd.s32 %s81, 1
      %p85 = scmp.eq.s32.totalorder %s12, 1
      %p86 = scmp.ne.s32.totalorder %s81, %s83
      %p87 = scmp.eq.s32.totalorder %s12, 0
      %p88 = por %p86, %p87
      %p89 = scmp.ne.s32.totalorder %s81, %s83
      %p90 = scmp.eq.s32.totalorder %s17, 1
      %p91 = por %p89, %p90
      %p92 = scmp.ne.s32.totalorder %s83, %s84
      %p93 = scmp.eq.s32.totalorder %s17, 0
      %p94 = por %p92, %p93
      %p95 = scmp.ne.s32.totalorder %s83, %s84
      %p96 = scmp.eq.s32.totalorder %s18, 1
      %p97 = por %p95, %p96
      %p99 = scmp.ne.s32.totalorder %s84, %s98
      %p100 = scmp.eq.s32.totalorder %s18, 0
      %p101 = por %p99, %p100
      %s102 = ssub.s32 %s19, %s31
      %s103 = ssub.s32 %s20, %s27
      %s104 = sor.u32 %s102, %s103
      %p105 = scmp.eq.s32.totalorder %s104, 0
      %s107 = sadd.s32 %s106, 1
      %s108 = scalar_select %p105, %s106, %s107
      %p111 = pneg %p105
      %p112 = scmp.eq.s32.totalorder %s12, 1
      %p113 = por %p111, %p112
      %p114 = scmp.ne.s32.totalorder %s106, %s109
      %p115 = scmp.eq.s32.totalorder %s12, 0
      %p116 = por %p114, %p115
      %p117 = scmp.ne.s32.totalorder %s106, %s109
      %p118 = scmp.eq.s32.totalorder %s17, 1
      %p119 = por %p117, %p118
      %p120 = scmp.ne.s32.totalorder %s109, %s110
      %p121 = scmp.eq.s32.totalorder %s17, 0
      %p122 = por %p120, %p121
      %p123 = scmp.ne.s32.totalorder %s109, %s110
      %p124 = scmp.eq.s32.totalorder %s18, 1
      %p125 = por %p123, %p124
      %p127 = scmp.ne.s32.totalorder %s110, %s126
      %p128 = scmp.eq.s32.totalorder %s18, 0
      %p129 = por %p127, %p128
      %p130 = scmp.le.s32.totalorder 1, %s12
      %p131 = scmp.lt.s32.totalorder %s12, 3
      %p132 = pnand %p130, %p131
      %p133 = pneg %p132
      // Predicated region
      $region9: #{tpu_custom_call.1} parent=5 // pred_check
        _
      $region10: #{tpu_custom_call.1} parent=5 // pred_check_branch
        %135 = sbr.rel (%p132) target = $region12
      $region11: #{tpu_custom_call.1} parent=5 // pred_region
        %s136 = ssub.s32 %s12, 1
        // Predicated region
        $region13: #{tpu_custom_call.1} parent=11 // pred_check
          %p137 = pneg %p73
        $region14: #{tpu_custom_call.1} parent=11 // pred_check_branch
          %139 = sbr.rel (%p137) target = $region16
        $region15: #{tpu_custom_call.1} parent=11 // pred_region
          _
        $region16: #{tpu_custom_call.1} parent=11 // pred_fallthru
          _
        // Predicated region
        $region17: #{tpu_custom_call.1} parent=11 // pred_check
          %p140 = pneg %p94
        $region18: #{tpu_custom_call.1} parent=11 // pred_check_branch
          %142 = sbr.rel (%p140) target = $region20
        $region19: #{tpu_custom_call.1} parent=11 // pred_region
          _
        $region20: #{tpu_custom_call.1} parent=11 // pred_fallthru
          _
      $region12: #{tpu_custom_call.1} parent=5 // pred_fallthru
        _
      %p143 = scmp.lt.s32.totalorder %s12, 2
      // Predicated region
      $region21: #{tpu_custom_call.1} parent=5 // pred_check
        %p144 = pneg %p143
      $region22: #{tpu_custom_call.1} parent=5 // pred_check_branch
        %146 = sbr.rel (%p144) target = $region24
      $region23: #{tpu_custom_call.1} parent=5 // pred_region
        // Predicated region
        $region25: #{tpu_custom_call.1} parent=23 // pred_check
          %p147 = pneg %p46
        $region26: #{tpu_custom_call.1} parent=23 // pred_check_branch
          %149 = sbr.rel (%p147) target = $region28
        $region27: #{tpu_custom_call.1} parent=23 // pred_region
          %p150 = scmp.lt.s32.totalorder %s19, 1
          %s151 = scalar_select %p150, %s19, 1
          %p152 = scmp.lt.s32.totalorder %s20, 0
          %s153 = scalar_select %p152, %s20, 0
          %s154 = sadd.s32 %s153, %s151
          %s155 = smul.addr %s154, 8
          %s156 = scalar_lea.vmem %s0, %s155
        $region28: #{tpu_custom_call.1} parent=23 // pred_fallthru
          _
      $region24: #{tpu_custom_call.1} parent=5 // pred_fallthru
        _
      %p157 = scmp.le.s32.totalorder 1, %s12
      %p158 = scmp.lt.s32.totalorder %s12, 3
      %p159 = pnand %p157, %p158
      %p160 = pneg %p159
      // Predicated region
      $region29: #{tpu_custom_call.1} parent=5 // pred_check
        _
      $region30: #{tpu_custom_call.1} parent=5 // pred_check_branch
        %162 = sbr.rel (%p159) target = $region32
      $region31: #{tpu_custom_call.1} parent=5 // pred_region
        %s163 = ssub.s32 %s12, 1
        %p164 = scmp.lt.s32.totalorder %s21, 1
        %s165 = scalar_select %p164, %s21, 1
        %p166 = scmp.lt.s32.totalorder %s22, 0
        %s167 = scalar_select %p166, %s22, 0
        %s168 = sadd.s32 %s167, %s165
        %s169 = smul.addr %s168, 8
        %s170 = scalar_lea.vmem %s0, %s169
        %p171 = pneg %p52
        %p172 = pneg %p49
        %p173 = pneg %p73
        %p174 = pneg %p70
        %p175 = pneg %p94
        %p176 = pneg %p91
        %p177 = pneg %p122
        %p178 = pneg %p119
        %s179 = sand.u32 %s109, 1
        %s180 = scalar_lea.sflag [#allocation3], %s179
        %s181 = sand.u32 %s109, 1
        %s182 = smul.addr %s181, 8
        %s183 = scalar_lea.vmem [#allocation2], %s182
        %p184 = scmp.lt.s32.totalorder %s21, 1
        %s185 = scalar_select %p184, %s21, 1
        %p186 = scmp.lt.s32.totalorder %s22, 0
        %s187 = scalar_select %p186, %s22, 0
        %s188 = sadd.s32 %s187, %s185
        %s189 = smul.addr %s188, 8
        %s190 = scalar_lea.vmem %s0, %s189
        %v191 = vld [vmem:[%s190] sm:$0xff]
        %v192 = vld [vmem:[%s1] sm:$0xff]
        %v193 = vld [vmem:[%s2] sm:$0xff]
        %vm194 = vcmask 130048
        %v195 = vsel %vm194, %v191, 0.0
        %v196 = vrot.slane %v195, 4
        %v197 = vadd.f32 %v195, %v196
        %v198 = vrot.slane %v197, 2
        %v199 = vadd.f32 %v197, %v198
        %v200 = vrot.slane %v199, 1
        %v201 = vadd.f32 %v199, %v200
        %v202 = vmul.f32 %v201, 0.25
        %v203 = vsub.f32 %v191, %v202
        %v204 = vlaneseq
        %v205 = vshrl.u32 %v204, 7
        %vm206 = vcmp.lt.s32.totalorder %v205, 4
        %v207 = vsel %vm206, %v203, 0.0
        %v208 = vmul.f32 %v207, %v207
        %v209 = vsel %vm194, %v208, 0.0
        %v210 = vrot.slane %v209, 4
        %v211 = vadd.f32 %v209, %v210
        %v212 = vrot.slane %v211, 2
        %v213 = vadd.f32 %v211, %v212
        %v214 = vrot.slane %v213, 1
        %v215 = vadd.f32 %v213, %v214
        %v216 = vmul.f32 %v215, 0.25
        %v217 = vadd.f32 %v216, 1e-05
        %v218 = vrsqrt.pop %v217
        %v219 = vmul.f32 %v218, %v217
        %v220 = vmul.f32 %v219, %v218
        %v221 = vmul.f32 0.5, %v220
        %v222 = vsub.f32 1.5, %v221
        %v223 = vmul.f32 %v218, %v222
        %vm224 = vweird.f32 %v217
        %vm225 = vweird.f32 %v218
        %vm226 = vmor %vm224, %vm225
        %v227 = vsel %vm226, %v218, %v223
        %v228 = vmul.f32 %v207, %v227
        %230 = vset.pattern.permute.xlu0 0
        %231 = vperm.xlu0 %230, %v192
        %v232 = vpop.permute.xlu0 %231
        %v234 = vmul.f32 %v228, %v232
        %236 = vset.pattern.permute.xlu0 0
        %237 = vperm.xlu0 %236, %v193
        %v238 = vpop.permute.xlu0 %237
        %v240 = vadd.f32 %v234, %v238
        %241 = vst.msk [vmem:[%s183] sm:$0xff] %vm194, %v240
        %s242 = sand.u32 %s109, 1
        %s243 = scalar_lea.sflag [#allocation3], %s242
        %s244 = sand.u32 %s109, 1
        %s245 = smul.addr %s244, 8
        %s246 = scalar_lea.vmem [#allocation2], %s245
        // Predicated region
        $region33: #{tpu_custom_call.1} parent=31 // pred_check
          %p247 = pneg %p119
        $region34: #{tpu_custom_call.1} parent=31 // pred_check_branch
          %249 = sbr.rel (%p247) target = $region36
        $region35: #{tpu_custom_call.1} parent=31 // pred_region
          %251 = vsyncadd %s243, 0
          %s252 = sadd.s32 %s22, %s21
          %s253 = smul.addr %s252, 8
          %s254 = scalar_lea.hbm %s3, %s253
          %s256 = sshll.u32 %s246, 4
          %s257 = int_to_ptr.vmem [resolvable:$true] %s256
          %s258 = sshll.u32 %s254, 4
          %s259 = int_to_ptr.hbm [resolvable:$true] %s258
          %261 = dma.vmem_to_hbm [thread:$0]  %s257, 128, %s259, %s243
        $region36: #{tpu_custom_call.1} parent=31 // pred_fallthru
          _
      $region32: #{tpu_custom_call.1} parent=5 // pred_fallthru
        _
      %p262 = scmp.le.s32.totalorder 2, %s12
      // Predicated region
      $region37: #{tpu_custom_call.1} parent=5 // pred_check
        %p263 = pneg %p262
      $region38: #{tpu_custom_call.1} parent=5 // pred_check_branch
        %265 = sbr.rel (%p263) target = $region40
      $region39: #{tpu_custom_call.1} parent=5 // pred_region
        %s266 = ssub.s32 %s12, 2
        // Predicated region
        $region41: #{tpu_custom_call.1} parent=39 // pred_check
          %p267 = pneg %p125
        $region42: #{tpu_custom_call.1} parent=39 // pred_check_branch
          %269 = sbr.rel (%p267) target = $region44
        $region43: #{tpu_custom_call.1} parent=39 // pred_region
          %s270 = sand.u32 %s110, 1
          %s271 = scalar_lea.sflag [#allocation3], %s270
          %s272 = sand.u32 %s110, 1
          %s273 = smul.addr %s272, 8
          %s274 = scalar_lea.vmem [#allocation2], %s273
          %276 = dma.done %s271, 128
        $region44: #{tpu_custom_call.1} parent=39 // pred_fallthru
          _
      $region40: #{tpu_custom_call.1} parent=5 // pred_fallthru
        _
    $region6: #{tpu_custom_call.1} parent=1 // loop_footer
      %s16 = sadd.s32 1, %s12
    $region7: #{tpu_custom_call.1} parent=1 // loop_footer_branch
      %11 = sbr.rel target = $region3
    $region8: #{tpu_custom_call.1} parent=1 // loop_exit
      _
    %277 = vsyncpa [#allocation3], 1
    %s278 = scalar_lea.sflag [#allocation3], 1
    %279 = vsyncpa %s278, 1

</llo_original>
